<compile_context>
chip_gen: v7x
topology: tpu7x:2x2x1
jax: 0.10.0
libtpu: 0.0.40
codegen_flags: <defaults>
</compile_context>

<pallas_src>
import jax
import jax.numpy as jnp
from jax.experimental import pallas as pl
from jax.experimental.pallas import tpu as pltpu

STATE_DIM1 = 4
STATE_DIM2 = 8
STATE_DIM = STATE_DIM1 + STATE_DIM2          # 12
ACTION_DIM = 2
LN_EPS = 1e-5                                # torch.nn.LayerNorm default eps

# fused layer widths: [branch1 | branch2]
L1_D1, L1_D2 = 128, 128                      # -> 256
L2_D1, L2_D2 = 64, 64                        # -> 128
L3_D1, L3_D2 = 64, 32                        # -> 96

TILE_B = 256                                 # batch tile (safe on v5e/v6e/v7x)


# ----------------------------- kernel helpers -----------------------------
def _dual_ln_relu(h, d1, d2, gamma, beta):
    """Per-branch LayerNorm (+ReLU) on lanes [0:d1] and [d1:d1+d2] of h.

    h: (B, d1+d2) f32.  gamma/beta: (1, d1+d2).  Uses full-lane-width VPU ops
    and masked lane reductions; no slicing/concat at non-vreg boundaries.
    """
    D = d1 + d2
    lane = jax.lax.broadcasted_iota(jnp.int32, (1, D), 1)
    m1 = (lane < d1).astype(jnp.float32)               # (1, D)
    m2 = 1.0 - m1                                      # D == d1 + d2 exactly

    mu1 = jnp.sum(h * m1, axis=-1, keepdims=True) * (1.0 / d1)   # (B, 1)
    mu2 = jnp.sum(h * m2, axis=-1, keepdims=True) * (1.0 / d2)
    mu = mu1 * m1 + mu2 * m2                                     # (B, D)
    hc = h - mu

    v1 = jnp.sum((hc * m1) ** 2, axis=-1, keepdims=True) * (1.0 / d1)
    v2 = jnp.sum((hc * m2) ** 2, axis=-1, keepdims=True) * (1.0 / d2)
    inv = jax.lax.rsqrt(v1 + LN_EPS) * m1 + jax.lax.rsqrt(v2 + LN_EPS) * m2

    return jnp.maximum(hc * inv * gamma + beta, 0.0)


# --------------------------------- kernel ---------------------------------
def actor_kernel(state_ref, w1_ref, w2_ref, w3_ref, wmu_ref, vecs_ref, out_ref):
    x = state_ref[...]                        # (TB, 12)
    vecs = vecs_ref[...]                      # (16, 256) packed bias/gamma/beta

    # fused layer 1: (TB,12) @ (12,256)  [block-diagonal w11 / w21]
    h = jnp.dot(x, w1_ref[...], preferred_element_type=jnp.float32) + vecs[0:1, :]
    h = _dual_ln_relu(h, L1_D1, L1_D2, vecs[1:2, :], vecs[2:3, :])

    # fused layer 2: (TB,256) @ (256,128)  [block-diagonal w12 / w22]
    h = jnp.dot(h, w2_ref[...], preferred_element_type=jnp.float32) + vecs[3:4, :128]
    h = _dual_ln_relu(h, L2_D1, L2_D2, vecs[4:5, :128], vecs[5:6, :128])

    # fused layer 3: (TB,128) @ (128,96)  [block-diagonal w13 / w23]
    h = jnp.dot(h, w3_ref[...], preferred_element_type=jnp.float32) + vecs[6:7, :96]
    h = _dual_ln_relu(h, L3_D1, L3_D2, vecs[7:8, :96], vecs[8:9, :96])

    # mu head: fused output is already [h1 | h2] in lane order -> no concat
    out = jnp.dot(h, wmu_ref[...], preferred_element_type=jnp.float32) \
        + vecs[9:10, :ACTION_DIM]
    out_ref[...] = jnp.tanh(out)


# ------------------------------ wrapper ------------------------------
def actor_forward(state, packed):
    """state: (B, 12) f32.  packed: (W1, W2, W3, WMU, vecs)."""
    W1, W2, W3, WMU, vecs = packed
    B = state.shape[0]

    # batch tiling: tile is a multiple of 8 (sublane), capped at TILE_B
    b8 = ((B + 7) // 8) * 8
    tb = min(TILE_B, b8)
    bp = ((B + tb - 1) // tb) * tb
    if bp != B:
        state = jnp.pad(state, ((0, bp - B), (0, 0)))
    grid = (bp // tb,)

    const2 = lambda i: (0, 0)                 # weights resident across steps

    out = pl.pallas_call(
        actor_kernel,
        out_shape=jax.ShapeDtypeStruct((bp, ACTION_DIM), jnp.float32),
        grid_spec=pltpu.PrefetchScalarGridSpec(
            num_scalar_prefetch=0,
            grid=grid,
            in_specs=[
                pl.BlockSpec((tb, STATE_DIM), lambda i: (i, 0)),
                pl.BlockSpec(W1.shape, const2),
                pl.BlockSpec(W2.shape, const2),
                pl.BlockSpec(W3.shape, const2),
                pl.BlockSpec(WMU.shape, const2),
                pl.BlockSpec(vecs.shape, const2),
            ],
            out_specs=pl.BlockSpec((tb, ACTION_DIM), lambda i: (i, 0)),
        ),
        compiler_params=pltpu.CompilerParams(
            dimension_semantics=("parallel",)),   # shard batch tiles (v7x 2 TCs)
    )(state, W1, W2, W3, WMU, vecs)
    return out[:B]


# ------------------------------ params ------------------------------
def make_raw_params(key):
    """Per-layer params in PyTorch layout semantics (weights as (in, out))."""
    ks = jax.random.split(key, 13)

    def lin(k, fi, fo):
        k1, k2 = jax.random.split(k)
        bound = 1.0 / (fi ** 0.5)
        w = jax.random.uniform(k1, (fi, fo), jnp.float32, -bound, bound)
        b = jax.random.uniform(k2, (fo,), jnp.float32, -bound, bound)
        return w, b

    def ln(k, d):
        # torch default is gamma=1, beta=0; randomize slightly to exercise path
        k1, k2 = jax.random.split(k)
        g = 1.0 + 0.1 * jax.random.normal(k1, (d,), jnp.float32)
        be = 0.1 * jax.random.normal(k2, (d,), jnp.float32)
        return g, be

    p = {}
    p["w11"], p["b11"] = lin(ks[0], STATE_DIM1, 128)
    p["g11"], p["be11"] = ln(ks[1], 128)
    p["w12"], p["b12"] = lin(ks[2], 128, 64)
    p["g12"], p["be12"] = ln(ks[3], 64)
    p["w13"], p["b13"] = lin(ks[4], 64, 64)
    p["g13"], p["be13"] = ln(ks[5], 64)
    p["w21"], p["b21"] = lin(ks[6], STATE_DIM2, 128)
    p["g21"], p["be21"] = ln(ks[7], 128)
    p["w22"], p["b22"] = lin(ks[8], 128, 64)
    p["g22"], p["be22"] = ln(ks[9], 64)
    p["w23"], p["b23"] = lin(ks[10], 64, 32)
    p["g23"], p["be23"] = ln(ks[11], 32)
    p["wmu"], p["bmu"] = lin(ks[12], 64 + 32, ACTION_DIM)
    return p


def pack_params(p):
    """Pack per-layer params into fused block-diagonal weights + one vec slab."""
    W1 = jnp.zeros((STATE_DIM, 256), jnp.float32)
    W1 = W1.at[:STATE_DIM1, :128].set(p["w11"])
    W1 = W1.at[STATE_DIM1:, 128:].set(p["w21"])

    W2 = jnp.zeros((256, 128), jnp.float32)
    W2 = W2.at[:128, :64].set(p["w12"])
    W2 = W2.at[128:, 64:].set(p["w22"])

    W3 = jnp.zeros((128, 96), jnp.float32)
    W3 = W3.at[:64, :64].set(p["w13"])
    W3 = W3.at[64:, 64:].set(p["w23"])

    WMU = p["wmu"]                                    # (96, ACTION_DIM)

    vecs = jnp.zeros((16, 256), jnp.float32)
    vecs = vecs.at[0, :].set(jnp.concatenate([p["b11"], p["b21"]]))
    vecs = vecs.at[1, :].set(jnp.concatenate([p["g11"], p["g21"]]))
    vecs = vecs.at[2, :].set(jnp.concatenate([p["be11"], p["be21"]]))
    vecs = vecs.at[3, :128].set(jnp.concatenate([p["b12"], p["b22"]]))
    vecs = vecs.at[4, :128].set(jnp.concatenate([p["g12"], p["g22"]]))
    vecs = vecs.at[5, :128].set(jnp.concatenate([p["be12"], p["be22"]]))
    vecs = vecs.at[6, :96].set(jnp.concatenate([p["b13"], p["b23"]]))
    vecs = vecs.at[7, :96].set(jnp.concatenate([p["g13"], p["g23"]]))
    vecs = vecs.at[8, :96].set(jnp.concatenate([p["be13"], p["be23"]]))
    vecs = vecs.at[9, :ACTION_DIM].set(p["bmu"])
    return (W1, W2, W3, WMU, vecs)


# ------------------------------ pure-JAX ref (unfused, matches PyTorch) -----
def actor_forward_ref(state, p):
    x1 = state[:, :STATE_DIM1]
    x2 = state[:, STATE_DIM1:STATE_DIM]

    def block(x, w, b, g, be):
        h = x @ w + b
        m = jnp.mean(h, axis=-1, keepdims=True)
        v = jnp.mean((h - m) ** 2, axis=-1, keepdims=True)
        return jnp.maximum((h - m) / jnp.sqrt(v + LN_EPS) * g + be, 0.0)

    h1 = block(x1, p["w11"], p["b11"], p["g11"], p["be11"])
    h1 = block(h1, p["w12"], p["b12"], p["g12"], p["be12"])
    h1 = block(h1, p["w13"], p["b13"], p["g13"], p["be13"])
    h2 = block(x2, p["w21"], p["b21"], p["g21"], p["be21"])
    h2 = block(h2, p["w22"], p["b22"], p["g22"], p["be22"])
    h2 = block(h2, p["w23"], p["b23"], p["g23"], p["be23"])
    h = jnp.concatenate([h1, h2], axis=-1)
    return jnp.tanh(h @ p["wmu"] + p["bmu"])


if __name__ == "__main__":
    key = jax.random.PRNGKey(0)
    k_state, k_state2, k_params = jax.random.split(key, 3)

    raw = make_raw_params(k_params)
    packed = pack_params(raw)

    # small batch (single tile)
    B = 8
    state = jax.random.normal(k_state, (B, STATE_DIM), jnp.float32)
    out = jax.block_until_ready(actor_forward(state, packed))
    ref = actor_forward_ref(state, raw)
    assert out.shape == (B, ACTION_DIM)
    assert jnp.allclose(out, ref, atol=1e-4, rtol=1e-4), "mismatch (B=8)"

    # larger, non-multiple batch (multi-tile grid + padding path)
    B2 = 600
    state2 = jax.random.normal(k_state2, (B2, STATE_DIM), jnp.float32)
    out2 = jax.block_until_ready(actor_forward(state2, packed))
    ref2 = actor_forward_ref(state2, raw)
    assert out2.shape == (B2, ACTION_DIM)
    assert jnp.allclose(out2, ref2, atol=1e-4, rtol=1e-4), "mismatch (B=600)"

    print("KERNEL_OK")
</pallas_src>

<mosaic_0001>
module attributes {stable_mosaic.version = 11 : i64} {
  func.func @actor_kernel(%arg0: i32, %arg1: memref<8x12xf32, #tpu.memory_space<vmem>>, %arg2: memref<12x256xf32, #tpu.memory_space<vmem>>, %arg3: memref<256x128xf32, #tpu.memory_space<vmem>>, %arg4: memref<128x96xf32, #tpu.memory_space<vmem>>, %arg5: memref<96x2xf32, #tpu.memory_space<vmem>>, %arg6: memref<16x256xf32, #tpu.memory_space<vmem>>, %arg7: memref<8x2xf32, #tpu.memory_space<vmem>>) attributes {dimension_semantics = [#tpu.dimension_semantics<parallel>], iteration_bounds = array<i64: 1>, scalar_prefetch = 0 : i64, scratch_operands = 0 : i64, tpu.core_type = #tpu.core_type<tc>, window_params = [{transform_indices = @transform_0, window_bounds = array<i64: 8, 12>}, {pipeline_mode = #tpu.pipeline_mode<synchronous>, transform_indices = @transform_1, window_bounds = array<i64: 12, 256>}, {pipeline_mode = #tpu.pipeline_mode<synchronous>, transform_indices = @transform_2, window_bounds = array<i64: 256, 128>}, {pipeline_mode = #tpu.pipeline_mode<synchronous>, transform_indices = @transform_3, window_bounds = array<i64: 128, 96>}, {pipeline_mode = #tpu.pipeline_mode<synchronous>, transform_indices = @transform_4, window_bounds = array<i64: 96, 2>}, {pipeline_mode = #tpu.pipeline_mode<synchronous>, transform_indices = @transform_5, window_bounds = array<i64: 16, 256>}, {transform_indices = @transform_6, window_bounds = array<i64: 8, 2>}]} {
    %c0 = arith.constant 0 : index
    %c0_0 = arith.constant 0 : index
    %0 = vector.load %arg1[%c0, %c0_0] : memref<8x12xf32, #tpu.memory_space<vmem>>, vector<8x12xf32>
    %c0_1 = arith.constant 0 : index
    %c0_2 = arith.constant 0 : index
    %1 = vector.load %arg6[%c0_1, %c0_2] : memref<16x256xf32, #tpu.memory_space<vmem>>, vector<16x256xf32>
    %c0_3 = arith.constant 0 : index
    %c0_4 = arith.constant 0 : index
    %2 = vector.load %arg2[%c0_3, %c0_4] : memref<12x256xf32, #tpu.memory_space<vmem>>, vector<12x256xf32>
    %cst = arith.constant dense<0.000000e+00> : vector<8x256xf32>
    %3 = tpu.matmul %0, %2, %cst {dimension_numbers = #tpu.dot_dimension_numbers<[1], [0], [0], [1], [0, 0, 1, 1], [], []>} : vector<8x12xf32>, vector<12x256xf32>, vector<8x256xf32> -> vector<8x256xf32>
    %4 = vector.extract_strided_slice %1 {offsets = [0, 0], sizes = [1, 256], strides = [1, 1]} : vector<16x256xf32> to vector<1x256xf32>
    %5 = vector.broadcast %4 : vector<1x256xf32> to vector<8x256xf32>
    %6 = arith.addf %3, %5 : vector<8x256xf32>
    %7 = vector.extract_strided_slice %1 {offsets = [1, 0], sizes = [1, 256], strides = [1, 1]} : vector<16x256xf32> to vector<1x256xf32>
    %8 = vector.extract_strided_slice %1 {offsets = [2, 0], sizes = [1, 256], strides = [1, 1]} : vector<16x256xf32> to vector<1x256xf32>
    %9 = tpu.iota {dimensions = array<i32: 1>} : vector<1x256xi32>
    %c128_i32 = arith.constant 128 : i32
    %10 = vector.broadcast %c128_i32 : i32 to vector<1x256xi32>
    %11 = arith.cmpi slt, %9, %10 : vector<1x256xi32>
    %12 = arith.extui %11 : vector<1x256xi1> to vector<1x256xi32>
    %13 = arith.sitofp %12 : vector<1x256xi32> to vector<1x256xf32>
    %cst_5 = arith.constant 1.000000e+00 : f32
    %14 = vector.broadcast %cst_5 : f32 to vector<1x256xf32>
    %15 = arith.subf %14, %13 : vector<1x256xf32>
    %16 = vector.broadcast %13 : vector<1x256xf32> to vector<8x256xf32>
    %17 = arith.mulf %6, %16 : vector<8x256xf32>
    %cst_6 = arith.constant dense<0.000000e+00> : vector<8xf32>
    %18 = vector.multi_reduction <add>, %17, %cst_6 [1] : vector<8x256xf32> to vector<8xf32>
    %19 = vector.shape_cast %18 : vector<8xf32> to vector<8x1xf32>
    %cst_7 = arith.constant 7.812500e-03 : f32
    %20 = vector.broadcast %cst_7 : f32 to vector<8x1xf32>
    %21 = arith.mulf %19, %20 : vector<8x1xf32>
    %22 = vector.broadcast %15 : vector<1x256xf32> to vector<8x256xf32>
    %23 = arith.mulf %6, %22 : vector<8x256xf32>
    %cst_8 = arith.constant dense<0.000000e+00> : vector<8xf32>
    %24 = vector.multi_reduction <add>, %23, %cst_8 [1] : vector<8x256xf32> to vector<8xf32>
    %25 = vector.shape_cast %24 : vector<8xf32> to vector<8x1xf32>
    %cst_9 = arith.constant 7.812500e-03 : f32
    %26 = vector.broadcast %cst_9 : f32 to vector<8x1xf32>
    %27 = arith.mulf %25, %26 : vector<8x1xf32>
    %28 = vector.broadcast %21 : vector<8x1xf32> to vector<8x256xf32>
    %29 = vector.broadcast %13 : vector<1x256xf32> to vector<8x256xf32>
    %30 = arith.mulf %28, %29 : vector<8x256xf32>
    %31 = vector.broadcast %27 : vector<8x1xf32> to vector<8x256xf32>
    %32 = vector.broadcast %15 : vector<1x256xf32> to vector<8x256xf32>
    %33 = arith.mulf %31, %32 : vector<8x256xf32>
    %34 = arith.addf %30, %33 : vector<8x256xf32>
    %35 = arith.subf %6, %34 : vector<8x256xf32>
    %36 = vector.broadcast %13 : vector<1x256xf32> to vector<8x256xf32>
    %37 = arith.mulf %35, %36 : vector<8x256xf32>
    %38 = arith.mulf %37, %37 : vector<8x256xf32>
    %cst_10 = arith.constant dense<0.000000e+00> : vector<8xf32>
    %39 = vector.multi_reduction <add>, %38, %cst_10 [1] : vector<8x256xf32> to vector<8xf32>
    %40 = vector.shape_cast %39 : vector<8xf32> to vector<8x1xf32>
    %cst_11 = arith.constant 7.812500e-03 : f32
    %41 = vector.broadcast %cst_11 : f32 to vector<8x1xf32>
    %42 = arith.mulf %40, %41 : vector<8x1xf32>
    %43 = vector.broadcast %15 : vector<1x256xf32> to vector<8x256xf32>
    %44 = arith.mulf %35, %43 : vector<8x256xf32>
    %45 = arith.mulf %44, %44 : vector<8x256xf32>
    %cst_12 = arith.constant dense<0.000000e+00> : vector<8xf32>
    %46 = vector.multi_reduction <add>, %45, %cst_12 [1] : vector<8x256xf32> to vector<8xf32>
    %47 = vector.shape_cast %46 : vector<8xf32> to vector<8x1xf32>
    %cst_13 = arith.constant 7.812500e-03 : f32
    %48 = vector.broadcast %cst_13 : f32 to vector<8x1xf32>
    %49 = arith.mulf %47, %48 : vector<8x1xf32>
    %cst_14 = arith.constant 9.99999974E-6 : f32
    %50 = vector.broadcast %cst_14 : f32 to vector<8x1xf32>
    %51 = arith.addf %42, %50 : vector<8x1xf32>
    %52 = math.rsqrt %51 : vector<8x1xf32>
    %53 = vector.broadcast %52 : vector<8x1xf32> to vector<8x256xf32>
    %54 = vector.broadcast %13 : vector<1x256xf32> to vector<8x256xf32>
    %55 = arith.mulf %53, %54 : vector<8x256xf32>
    %cst_15 = arith.constant 9.99999974E-6 : f32
    %56 = vector.broadcast %cst_15 : f32 to vector<8x1xf32>
    %57 = arith.addf %49, %56 : vector<8x1xf32>
    %58 = math.rsqrt %57 : vector<8x1xf32>
    %59 = vector.broadcast %58 : vector<8x1xf32> to vector<8x256xf32>
    %60 = vector.broadcast %15 : vector<1x256xf32> to vector<8x256xf32>
    %61 = arith.mulf %59, %60 : vector<8x256xf32>
    %62 = arith.addf %55, %61 : vector<8x256xf32>
    %63 = arith.mulf %35, %62 : vector<8x256xf32>
    %64 = vector.broadcast %7 : vector<1x256xf32> to vector<8x256xf32>
    %65 = arith.mulf %63, %64 : vector<8x256xf32>
    %66 = vector.broadcast %8 : vector<1x256xf32> to vector<8x256xf32>
    %67 = arith.addf %65, %66 : vector<8x256xf32>
    %cst_16 = arith.constant 0.000000e+00 : f32
    %68 = vector.broadcast %cst_16 : f32 to vector<8x256xf32>
    %69 = arith.maximumf %67, %68 : vector<8x256xf32>
    %c0_17 = arith.constant 0 : index
    %c0_18 = arith.constant 0 : index
    %70 = vector.load %arg3[%c0_17, %c0_18] : memref<256x128xf32, #tpu.memory_space<vmem>>, vector<256x128xf32>
    %cst_19 = arith.constant dense<0.000000e+00> : vector<8x128xf32>
    %71 = tpu.matmul %69, %70, %cst_19 {dimension_numbers = #tpu.dot_dimension_numbers<[1], [0], [0], [1], [0, 0, 1, 1], [], []>} : vector<8x256xf32>, vector<256x128xf32>, vector<8x128xf32> -> vector<8x128xf32>
    %72 = vector.extract_strided_slice %1 {offsets = [3, 0], sizes = [1, 128], strides = [1, 1]} : vector<16x256xf32> to vector<1x128xf32>
    %73 = vector.broadcast %72 : vector<1x128xf32> to vector<8x128xf32>
    %74 = arith.addf %71, %73 : vector<8x128xf32>
    %75 = vector.extract_strided_slice %1 {offsets = [4, 0], sizes = [1, 128], strides = [1, 1]} : vector<16x256xf32> to vector<1x128xf32>
    %76 = vector.extract_strided_slice %1 {offsets = [5, 0], sizes = [1, 128], strides = [1, 1]} : vector<16x256xf32> to vector<1x128xf32>
    %77 = tpu.iota {dimensions = array<i32: 1>} : vector<1x128xi32>
    %c64_i32 = arith.constant 64 : i32
    %78 = vector.broadcast %c64_i32 : i32 to vector<1x128xi32>
    %79 = arith.cmpi slt, %77, %78 : vector<1x128xi32>
    %80 = arith.extui %79 : vector<1x128xi1> to vector<1x128xi32>
    %81 = arith.sitofp %80 : vector<1x128xi32> to vector<1x128xf32>
    %cst_20 = arith.constant 1.000000e+00 : f32
    %82 = vector.broadcast %cst_20 : f32 to vector<1x128xf32>
    %83 = arith.subf %82, %81 : vector<1x128xf32>
    %84 = vector.broadcast %81 : vector<1x128xf32> to vector<8x128xf32>
    %85 = arith.mulf %74, %84 : vector<8x128xf32>
    %cst_21 = arith.constant dense<0.000000e+00> : vector<8xf32>
    %86 = vector.multi_reduction <add>, %85, %cst_21 [1] : vector<8x128xf32> to vector<8xf32>
    %87 = vector.shape_cast %86 : vector<8xf32> to vector<8x1xf32>
    %cst_22 = arith.constant 1.562500e-02 : f32
    %88 = vector.broadcast %cst_22 : f32 to vector<8x1xf32>
    %89 = arith.mulf %87, %88 : vector<8x1xf32>
    %90 = vector.broadcast %83 : vector<1x128xf32> to vector<8x128xf32>
    %91 = arith.mulf %74, %90 : vector<8x128xf32>
    %cst_23 = arith.constant dense<0.000000e+00> : vector<8xf32>
    %92 = vector.multi_reduction <add>, %91, %cst_23 [1] : vector<8x128xf32> to vector<8xf32>
    %93 = vector.shape_cast %92 : vector<8xf32> to vector<8x1xf32>
    %cst_24 = arith.constant 1.562500e-02 : f32
    %94 = vector.broadcast %cst_24 : f32 to vector<8x1xf32>
    %95 = arith.mulf %93, %94 : vector<8x1xf32>
    %96 = vector.broadcast %89 : vector<8x1xf32> to vector<8x128xf32>
    %97 = vector.broadcast %81 : vector<1x128xf32> to vector<8x128xf32>
    %98 = arith.mulf %96, %97 : vector<8x128xf32>
    %99 = vector.broadcast %95 : vector<8x1xf32> to vector<8x128xf32>
    %100 = vector.broadcast %83 : vector<1x128xf32> to vector<8x128xf32>
    %101 = arith.mulf %99, %100 : vector<8x128xf32>
    %102 = arith.addf %98, %101 : vector<8x128xf32>
    %103 = arith.subf %74, %102 : vector<8x128xf32>
    %104 = vector.broadcast %81 : vector<1x128xf32> to vector<8x128xf32>
    %105 = arith.mulf %103, %104 : vector<8x128xf32>
    %106 = arith.mulf %105, %105 : vector<8x128xf32>
    %cst_25 = arith.constant dense<0.000000e+00> : vector<8xf32>
    %107 = vector.multi_reduction <add>, %106, %cst_25 [1] : vector<8x128xf32> to vector<8xf32>
    %108 = vector.shape_cast %107 : vector<8xf32> to vector<8x1xf32>
    %cst_26 = arith.constant 1.562500e-02 : f32
    %109 = vector.broadcast %cst_26 : f32 to vector<8x1xf32>
    %110 = arith.mulf %108, %109 : vector<8x1xf32>
    %111 = vector.broadcast %83 : vector<1x128xf32> to vector<8x128xf32>
    %112 = arith.mulf %103, %111 : vector<8x128xf32>
    %113 = arith.mulf %112, %112 : vector<8x128xf32>
    %cst_27 = arith.constant dense<0.000000e+00> : vector<8xf32>
    %114 = vector.multi_reduction <add>, %113, %cst_27 [1] : vector<8x128xf32> to vector<8xf32>
    %115 = vector.shape_cast %114 : vector<8xf32> to vector<8x1xf32>
    %cst_28 = arith.constant 1.562500e-02 : f32
    %116 = vector.broadcast %cst_28 : f32 to vector<8x1xf32>
    %117 = arith.mulf %115, %116 : vector<8x1xf32>
    %cst_29 = arith.constant 9.99999974E-6 : f32
    %118 = vector.broadcast %cst_29 : f32 to vector<8x1xf32>
    %119 = arith.addf %110, %118 : vector<8x1xf32>
    %120 = math.rsqrt %119 : vector<8x1xf32>
    %121 = vector.broadcast %120 : vector<8x1xf32> to vector<8x128xf32>
    %122 = vector.broadcast %81 : vector<1x128xf32> to vector<8x128xf32>
    %123 = arith.mulf %121, %122 : vector<8x128xf32>
    %cst_30 = arith.constant 9.99999974E-6 : f32
    %124 = vector.broadcast %cst_30 : f32 to vector<8x1xf32>
    %125 = arith.addf %117, %124 : vector<8x1xf32>
    %126 = math.rsqrt %125 : vector<8x1xf32>
    %127 = vector.broadcast %126 : vector<8x1xf32> to vector<8x128xf32>
    %128 = vector.broadcast %83 : vector<1x128xf32> to vector<8x128xf32>
    %129 = arith.mulf %127, %128 : vector<8x128xf32>
    %130 = arith.addf %123, %129 : vector<8x128xf32>
    %131 = arith.mulf %103, %130 : vector<8x128xf32>
    %132 = vector.broadcast %75 : vector<1x128xf32> to vector<8x128xf32>
    %133 = arith.mulf %131, %132 : vector<8x128xf32>
    %134 = vector.broadcast %76 : vector<1x128xf32> to vector<8x128xf32>
    %135 = arith.addf %133, %134 : vector<8x128xf32>
    %cst_31 = arith.constant 0.000000e+00 : f32
    %136 = vector.broadcast %cst_31 : f32 to vector<8x128xf32>
    %137 = arith.maximumf %135, %136 : vector<8x128xf32>
    %c0_32 = arith.constant 0 : index
    %c0_33 = arith.constant 0 : index
    %138 = vector.load %arg4[%c0_32, %c0_33] : memref<128x96xf32, #tpu.memory_space<vmem>>, vector<128x96xf32>
    %cst_34 = arith.constant dense<0.000000e+00> : vector<8x96xf32>
    %139 = tpu.matmul %137, %138, %cst_34 {dimension_numbers = #tpu.dot_dimension_numbers<[1], [0], [0], [1], [0, 0, 1, 1], [], []>} : vector<8x128xf32>, vector<128x96xf32>, vector<8x96xf32> -> vector<8x96xf32>
    %140 = vector.extract_strided_slice %1 {offsets = [6, 0], sizes = [1, 96], strides = [1, 1]} : vector<16x256xf32> to vector<1x96xf32>
    %141 = vector.broadcast %140 : vector<1x96xf32> to vector<8x96xf32>
    %142 = arith.addf %139, %141 : vector<8x96xf32>
    %143 = vector.extract_strided_slice %1 {offsets = [7, 0], sizes = [1, 96], strides = [1, 1]} : vector<16x256xf32> to vector<1x96xf32>
    %144 = vector.extract_strided_slice %1 {offsets = [8, 0], sizes = [1, 96], strides = [1, 1]} : vector<16x256xf32> to vector<1x96xf32>
    %145 = tpu.iota {dimensions = array<i32: 1>} : vector<1x96xi32>
    %c64_i32_35 = arith.constant 64 : i32
    %146 = vector.broadcast %c64_i32_35 : i32 to vector<1x96xi32>
    %147 = arith.cmpi slt, %145, %146 : vector<1x96xi32>
    %148 = arith.extui %147 : vector<1x96xi1> to vector<1x96xi32>
    %149 = arith.sitofp %148 : vector<1x96xi32> to vector<1x96xf32>
    %cst_36 = arith.constant 1.000000e+00 : f32
    %150 = vector.broadcast %cst_36 : f32 to vector<1x96xf32>
    %151 = arith.subf %150, %149 : vector<1x96xf32>
    %152 = vector.broadcast %149 : vector<1x96xf32> to vector<8x96xf32>
    %153 = arith.mulf %142, %152 : vector<8x96xf32>
    %cst_37 = arith.constant dense<0.000000e+00> : vector<8xf32>
    %154 = vector.multi_reduction <add>, %153, %cst_37 [1] : vector<8x96xf32> to vector<8xf32>
    %155 = vector.shape_cast %154 : vector<8xf32> to vector<8x1xf32>
    %cst_38 = arith.constant 1.562500e-02 : f32
    %156 = vector.broadcast %cst_38 : f32 to vector<8x1xf32>
    %157 = arith.mulf %155, %156 : vector<8x1xf32>
    %158 = vector.broadcast %151 : vector<1x96xf32> to vector<8x96xf32>
    %159 = arith.mulf %142, %158 : vector<8x96xf32>
    %cst_39 = arith.constant dense<0.000000e+00> : vector<8xf32>
    %160 = vector.multi_reduction <add>, %159, %cst_39 [1] : vector<8x96xf32> to vector<8xf32>
    %161 = vector.shape_cast %160 : vector<8xf32> to vector<8x1xf32>
    %cst_40 = arith.constant 3.125000e-02 : f32
    %162 = vector.broadcast %cst_40 : f32 to vector<8x1xf32>
    %163 = arith.mulf %161, %162 : vector<8x1xf32>
    %164 = vector.broadcast %157 : vector<8x1xf32> to vector<8x96xf32>
    %165 = vector.broadcast %149 : vector<1x96xf32> to vector<8x96xf32>
    %166 = arith.mulf %164, %165 : vector<8x96xf32>
    %167 = vector.broadcast %163 : vector<8x1xf32> to vector<8x96xf32>
    %168 = vector.broadcast %151 : vector<1x96xf32> to vector<8x96xf32>
    %169 = arith.mulf %167, %168 : vector<8x96xf32>
    %170 = arith.addf %166, %169 : vector<8x96xf32>
    %171 = arith.subf %142, %170 : vector<8x96xf32>
    %172 = vector.broadcast %149 : vector<1x96xf32> to vector<8x96xf32>
    %173 = arith.mulf %171, %172 : vector<8x96xf32>
    %174 = arith.mulf %173, %173 : vector<8x96xf32>
    %cst_41 = arith.constant dense<0.000000e+00> : vector<8xf32>
    %175 = vector.multi_reduction <add>, %174, %cst_41 [1] : vector<8x96xf32> to vector<8xf32>
    %176 = vector.shape_cast %175 : vector<8xf32> to vector<8x1xf32>
    %cst_42 = arith.constant 1.562500e-02 : f32
    %177 = vector.broadcast %cst_42 : f32 to vector<8x1xf32>
    %178 = arith.mulf %176, %177 : vector<8x1xf32>
    %179 = vector.broadcast %151 : vector<1x96xf32> to vector<8x96xf32>
    %180 = arith.mulf %171, %179 : vector<8x96xf32>
    %181 = arith.mulf %180, %180 : vector<8x96xf32>
    %cst_43 = arith.constant dense<0.000000e+00> : vector<8xf32>
    %182 = vector.multi_reduction <add>, %181, %cst_43 [1] : vector<8x96xf32> to vector<8xf32>
    %183 = vector.shape_cast %182 : vector<8xf32> to vector<8x1xf32>
    %cst_44 = arith.constant 3.125000e-02 : f32
    %184 = vector.broadcast %cst_44 : f32 to vector<8x1xf32>
    %185 = arith.mulf %183, %184 : vector<8x1xf32>
    %cst_45 = arith.constant 9.99999974E-6 : f32
    %186 = vector.broadcast %cst_45 : f32 to vector<8x1xf32>
    %187 = arith.addf %178, %186 : vector<8x1xf32>
    %188 = math.rsqrt %187 : vector<8x1xf32>
    %189 = vector.broadcast %188 : vector<8x1xf32> to vector<8x96xf32>
    %190 = vector.broadcast %149 : vector<1x96xf32> to vector<8x96xf32>
    %191 = arith.mulf %189, %190 : vector<8x96xf32>
    %cst_46 = arith.constant 9.99999974E-6 : f32
    %192 = vector.broadcast %cst_46 : f32 to vector<8x1xf32>
    %193 = arith.addf %185, %192 : vector<8x1xf32>
    %194 = math.rsqrt %193 : vector<8x1xf32>
    %195 = vector.broadcast %194 : vector<8x1xf32> to vector<8x96xf32>
    %196 = vector.broadcast %151 : vector<1x96xf32> to vector<8x96xf32>
    %197 = arith.mulf %195, %196 : vector<8x96xf32>
    %198 = arith.addf %191, %197 : vector<8x96xf32>
    %199 = arith.mulf %171, %198 : vector<8x96xf32>
    %200 = vector.broadcast %143 : vector<1x96xf32> to vector<8x96xf32>
    %201 = arith.mulf %199, %200 : vector<8x96xf32>
    %202 = vector.broadcast %144 : vector<1x96xf32> to vector<8x96xf32>
    %203 = arith.addf %201, %202 : vector<8x96xf32>
    %cst_47 = arith.constant 0.000000e+00 : f32
    %204 = vector.broadcast %cst_47 : f32 to vector<8x96xf32>
    %205 = arith.maximumf %203, %204 : vector<8x96xf32>
    %c0_48 = arith.constant 0 : index
    %c0_49 = arith.constant 0 : index
    %206 = vector.load %arg5[%c0_48, %c0_49] : memref<96x2xf32, #tpu.memory_space<vmem>>, vector<96x2xf32>
    %cst_50 = arith.constant dense<0.000000e+00> : vector<8x2xf32>
    %207 = tpu.matmul %205, %206, %cst_50 {dimension_numbers = #tpu.dot_dimension_numbers<[1], [0], [0], [1], [0, 0, 1, 1], [], []>} : vector<8x96xf32>, vector<96x2xf32>, vector<8x2xf32> -> vector<8x2xf32>
    %208 = vector.extract_strided_slice %1 {offsets = [9, 0], sizes = [1, 2], strides = [1, 1]} : vector<16x256xf32> to vector<1x2xf32>
    %209 = vector.broadcast %208 : vector<1x2xf32> to vector<8x2xf32>
    %210 = arith.addf %207, %209 : vector<8x2xf32>
    %211 = math.tanh %210 : vector<8x2xf32>
    %c0_51 = arith.constant 0 : index
    %c0_52 = arith.constant 0 : index
    %212 = vector.load %arg7[%c0_51, %c0_52] : memref<8x2xf32, #tpu.memory_space<vmem>>, vector<8x2xf32>
    tpu.vector_store %arg7[%c0_51, %c0_52], %211 {strides = array<i32>} : memref<8x2xf32, #tpu.memory_space<vmem>>, vector<8x2xf32>,
    return
  }
  func.func @transform_0(%arg0: i32) -> (i32, i32) {
    %c0_i32 = arith.constant 0 : i32
    %c0_i32_0 = arith.constant 0 : i32
    return %arg0, %c0_i32 : i32, i32
  }
  func.func @transform_1(%arg0: i32) -> (i32, i32) {
    %c0_i32 = arith.constant 0 : i32
    %c0_i32_0 = arith.constant 0 : i32
    %c0_i32_1 = arith.constant 0 : i32
    return %c0_i32, %c0_i32_0 : i32, i32
  }
  func.func @transform_2(%arg0: i32) -> (i32, i32) {
    %c0_i32 = arith.constant 0 : i32
    %c0_i32_0 = arith.constant 0 : i32
    %c0_i32_1 = arith.constant 0 : i32
    return %c0_i32, %c0_i32_0 : i32, i32
  }
  func.func @transform_3(%arg0: i32) -> (i32, i32) {
    %c0_i32 = arith.constant 0 : i32
    %c0_i32_0 = arith.constant 0 : i32
    %c0_i32_1 = arith.constant 0 : i32
    return %c0_i32, %c0_i32_0 : i32, i32
  }
  func.func @transform_4(%arg0: i32) -> (i32, i32) {
    %c0_i32 = arith.constant 0 : i32
    %c0_i32_0 = arith.constant 0 : i32
    %c0_i32_1 = arith.constant 0 : i32
    return %c0_i32, %c0_i32_0 : i32, i32
  }
  func.func @transform_5(%arg0: i32) -> (i32, i32) {
    %c0_i32 = arith.constant 0 : i32
    %c0_i32_0 = arith.constant 0 : i32
    %c0_i32_1 = arith.constant 0 : i32
    return %c0_i32, %c0_i32_0 : i32, i32
  }
  func.func @transform_6(%arg0: i32) -> (i32, i32) {
    %c0_i32 = arith.constant 0 : i32
    %c0_i32_0 = arith.constant 0 : i32
    return %arg0, %c0_i32 : i32, i32
  }
}

</mosaic_0001>

<llo_original>
// kernel: tpu_custom_call.1
$region0: #{tpu_custom_call.1}
  #allocation0 [shape = 'u32[]', space=smem, size = 0x4, offset = 0x4, fixed_abs, tag = 'smem constant byte address 0x4 - core index']
  #allocation1 [shape = 'u32[144,128]{1,0:T(1,128)}', space=vmem, size = 0x12000, scoped, tag = 'internal scratch']
  %s0 = inlined_call_operand.vmem [shape: f32[8,12], index: 0, kind: input, shape index: {}]
  %s1 = inlined_call_operand.vmem [shape: f32[12,256], index: 1, kind: input, shape index: {}]
  %s2 = inlined_call_operand.vmem [shape: f32[256,128], index: 2, kind: input, shape index: {}]
  %s3 = inlined_call_operand.vmem [shape: f32[128,96], index: 3, kind: input, shape index: {}]
  %s4 = inlined_call_operand.vmem [shape: f32[96,2], index: 4, kind: input, shape index: {}]
  %s5 = inlined_call_operand.vmem [shape: f32[16,256], index: 5, kind: input, shape index: {}]
  %s6 = inlined_call_operand.vmem [shape: f32[8,2], index: 6, kind: output, shape index: {}]
  %s7 = sld [smem:[#allocation0]]
  $region34: #{tpu_custom_call.1} parent=0
    _
  %s9 = ssub.s32 1, %s7
  %s10 = scalar_select 0, %s9, %s7
  // Predicated region
  $region2: #{tpu_custom_call.1} parent=0 // pred_check
    _
  $region3: #{tpu_custom_call.1} parent=0 // pred_check_branch
    %12 = sbr.rel (0) target = $region5
  $region4: #{tpu_custom_call.1} parent=0 // pred_region
    _
  $region5: #{tpu_custom_call.1} parent=0 // pred_fallthru
    _
  // Predicated region
  $region6: #{tpu_custom_call.1} parent=0 // pred_check
    _
  $region7: #{tpu_custom_call.1} parent=0 // pred_check_branch
    %14 = sbr.rel (0) target = $region9
  $region8: #{tpu_custom_call.1} parent=0 // pred_region
    _
  $region9: #{tpu_custom_call.1} parent=0 // pred_fallthru
    _
  // Predicated region
  $region10: #{tpu_custom_call.1} parent=0 // pred_check
    _
  $region11: #{tpu_custom_call.1} parent=0 // pred_check_branch
    %16 = sbr.rel (0) target = $region13
  $region12: #{tpu_custom_call.1} parent=0 // pred_region
    _
  $region13: #{tpu_custom_call.1} parent=0 // pred_fallthru
    _
  // Predicated region
  $region14: #{tpu_custom_call.1} parent=0 // pred_check
    _
  $region15: #{tpu_custom_call.1} parent=0 // pred_check_branch
    %18 = sbr.rel (0) target = $region17
  $region16: #{tpu_custom_call.1} parent=0 // pred_region
    _
  $region17: #{tpu_custom_call.1} parent=0 // pred_fallthru
    _
  // Predicated region
  $region18: #{tpu_custom_call.1} parent=0 // pred_check
    _
  $region19: #{tpu_custom_call.1} parent=0 // pred_check_branch
    %20 = sbr.rel (0) target = $region21
  $region20: #{tpu_custom_call.1} parent=0 // pred_region
    _
  $region21: #{tpu_custom_call.1} parent=0 // pred_fallthru
    _
  // Predicated region
  $region22: #{tpu_custom_call.1} parent=0 // pred_check
    _
  $region23: #{tpu_custom_call.1} parent=0 // pred_check_branch
    %22 = sbr.rel (0) target = $region25
  $region24: #{tpu_custom_call.1} parent=0 // pred_region
    _
  $region25: #{tpu_custom_call.1} parent=0 // pred_fallthru
    _
  %v23 = vld [vmem:[%s0] sm:$0xff]
  %v24 = vld [vmem:[%s5] sm:$0xff]
  %v25 = vld [vmem:[%s5 + $0x8] sm:$0xff]
  %v26 = vld [vmem:[%s5 + $0x10] sm:$0xff]
  %v27 = vld [vmem:[%s1] sm:$0xff]
  %v28 = vld [vmem:[%s1 + $0x8] sm:$0xff]
  %v29 = vld [vmem:[%s1 + $0x10] sm:$0xf]
  %v30 = vld [vmem:[%s1 + $0x18] sm:$0xf]
  %v31 = vlaneseq
  %v32 = vshrl.u32 %v31, 7
  %v33 = vsub.s32 0, %v32
  %v34 = vrot.slane %v24, %v33
  %v35 = vlaneseq
  %v36 = vshrl.u32 %v35, 7
  %v37 = vsub.s32 0, %v36
  %v38 = vrot.slane %v25, %v37
  %vm39 = vcmask 97280
  %v41 = vsel %vm39, %v23, 0
  %vm43 = vcmask 1043456
  %v45 = vsel %vm43, %v29, 0
  %v48 = vsel %vm43, %v30, 0
  %50 = vmatprep.subr.mxu0 %v28
  %51 = vmatpush1.msra.mxu0 %v27
  %52 = vmatprep.subr.mxu0 %v48
  %53 = vmatpush1.msra.mxu0 %v45
  %54 = vmatprep.subr.mxu0 0.0
  %55 = vmatpush1.msra.mxu0 0.0
  %56 = vmatprep.subr.mxu0 0.0
  %57 = vmatpush1.msra.mxu0 0.0
  %58 = vmatprep.subr.mxu0 0.0
  %59 = vmatpush1.msra.mxu0 0.0
  %60 = vmatprep.subr.mxu0 0.0
  %61 = vmatpush1.msra.mxu0 0.0
  %62 = vmatprep.subr.mxu0 0.0
  %63 = vmatpush1.msra.mxu0 0.0
  %64 = vmatprep.subr.mxu0 0.0
  %65 = vmatpush1.msra.mxu0 0.0
  %66 = vmatprep.subr.mxu0 0.0
  %67 = vmatpush1.msra.mxu0 0.0
  %68 = vmatprep.subr.mxu0 0.0
  %69 = vmatpush1.msra.mxu0 0.0
  %70 = vmatprep.subr.mxu0 0.0
  %71 = vmatpush1.msra.mxu0 0.0
  %72 = vmatprep.subr.mxu0 0.0
  %73 = vmatpush1.msra.mxu0 0.0
  %74 = vmatprep.subr.mxu0 0.0
  %75 = vmatpush1.msra.mxu0 0.0
  %76 = vmatprep.subr.mxu0 0.0
  %77 = vmatpush1.msra.mxu0 0.0
  %78 = vmatprep.subr.mxu0 0.0
  %79 = vmatpush1.msra.mxu0 0.0
  %80 = vmatprep.subr.mxu0 0.0
  %81 = vmatpush1.msra.mxu0 0.0
  %82 = vmatprep.subr.mxu0 0.0
  %83 = vmatpush1.msra.mxu0 0.0
  %84 = vmatprep.subr.mxu0 0.0
  %85 = vmatpush1.msra.mxu0 0.0
  %86 = vmatprep.subr.mxu0 0.0
  %87 = vmatpush1.msra.mxu0 0.0
  %88 = vmatprep.subr.mxu0 0.0
  %89 = vmatpush1.msra.mxu0 0.0
  %90 = vmatprep.subr.mxu0 0.0
  %91 = vmatpush1.msra.mxu0 0.0
  %92 = vmatprep.subr.mxu0 0.0
  %93 = vmatpush1.msra.mxu0 0.0
  %94 = vmatprep.subr.mxu0 0.0
  %95 = vmatpush1.msra.mxu0 0.0
  %96 = vmatprep.subr.mxu0 0.0
  %97 = vmatpush1.msra.mxu0 0.0
  %98 = vmatprep.subr.mxu0 0.0
  %99 = vmatpush1.msra.mxu0 0.0
  %100 = vmatprep.subr.mxu0 0.0
  %101 = vmatpush1.msra.mxu0 0.0
  %102 = vmatprep.subr.mxu0 0.0
  %103 = vmatpush1.msra.mxu0 0.0
  %104 = vmatprep.subr.mxu0 0.0
  %105 = vmatpush1.msra.mxu0 0.0
  %106 = vmatprep.subr.mxu0 0.0
  %107 = vmatpush1.msra.mxu0 0.0
  %108 = vmatprep.subr.mxu0 0.0
  %109 = vmatpush1.msra.mxu0 0.0
  %110 = vmatprep.subr.mxu0 0.0
  %111 = vmatpush1.msra.mxu0 0.0
  %112 = vmatprep.subr.mxu0 0.0
  %113 = vmatpush1.msra.mxu0 0.0
  %114 = vmatprep.mubr.f32.mxu0 0.0
  %115 = vmatmul.mubr.f32.gmra.mrb[0].mxu0 %v41
  %v116 = vpop.f32.mrb[0].mxu0
  %v117 = vadd.f32 %v34, %v116
  %v118 = vpop.f32.mrb[0].mxu0
  %v119 = vadd.f32 %v38, %v118
  %120 = vdwg.mxu0
  %v121 = vlaneseq
  %v122 = vand.u32 %v121, 127
  %v123 = vadd.s32 %v122, 128
  %vm124 = vcmp.lt.s32.totalorder %v122, 128
  %vm125 = vcmp.lt.s32.totalorder %v123, 128
  %v126 = vsel %vm124, 1, 0
  %v127 = vsel %vm125, 1, 0
  %v128 = vcvt.s32.f32 %v126
  %v129 = vcvt.s32.f32 %v127
  %v130 = vsub.f32 1.0, %v128
  %v131 = vsub.f32 1.0, %v129
  %v132 = vmul.f32 %v117, %v128
  %v133 = vmul.f32 %v119, %v129
  %v134 = vadd.f32 %v132, %v133
  %135 = vadd.xlane.f32.xlu0 %v134
  %v136 = vpop.xlane.xlu0 %135
  %v137 = vmul.f32 %v136, 0.0078125
  %v138 = vmul.f32 %v117, %v130
  %v139 = vmul.f32 %v119, %v131
  %v140 = vadd.f32 %v138, %v139
  %141 = vadd.xlane.f32.xlu0 %v140
  %v142 = vpop.xlane.xlu0 %141
  %v143 = vmul.f32 %v142, 0.0078125
  %v144 = vmul.f32 %v137, %v128
  %v145 = vmul.f32 %v137, %v129
  %v146 = vmul.f32 %v143, %v130
  %v147 = vmul.f32 %v143, %v131
  %v148 = vadd.f32 %v144, %v146
  %v149 = vadd.f32 %v145, %v147
  %v150 = vsub.f32 %v117, %v148
  %v151 = vsub.f32 %v119, %v149
  %v152 = vmul.f32 %v150, %v128
  %v153 = vmul.f32 %v151, %v129
  %v154 = vmul.f32 %v152, %v152
  %v155 = vmul.f32 %v153, %v153
  %v156 = vadd.f32 %v154, %v155
  %157 = vadd.xlane.f32.xlu0 %v156
  %v158 = vpop.xlane.xlu0 %157
  %v159 = vmul.f32 %v158, 0.0078125
  %v160 = vmul.f32 %v150, %v130
  %v161 = vmul.f32 %v151, %v131
  %v162 = vmul.f32 %v160, %v160
  %v163 = vmul.f32 %v161, %v161
  %v164 = vadd.f32 %v162, %v163
  %165 = vadd.xlane.f32.xlu0 %v164
  %v166 = vpop.xlane.xlu0 %165
  %v167 = vmul.f32 %v166, 0.0078125
  %v168 = vadd.f32 %v159, 1e-05
  %v169 = vrsqrt.pop %v168
  %v170 = vmul.f32 %v169, %v128
  %v171 = vmul.f32 %v169, %v129
  %v172 = vadd.f32 %v167, 1e-05
  %v173 = vrsqrt.pop %v172
  %v174 = vmul.f32 %v173, %v130
  %v175 = vmul.f32 %v173, %v131
  %v176 = vadd.f32 %v170, %v174
  %v177 = vadd.f32 %v171, %v175
  %v178 = vmul.f32 %v150, %v176
  %v179 = vmul.f32 %v151, %v177
  %v180 = vlaneseq
  %v181 = vshrl.u32 %v180, 7
  %v182 = vsub.s32 1, %v181
  %v183 = vrot.slane %v24, %v182
  %v184 = vlaneseq
  %v185 = vshrl.u32 %v184, 7
  %v186 = vsub.s32 1, %v185
  %v187 = vrot.slane %v25, %v186
  %v188 = vmul.f32 %v178, %v183
  %v189 = vmul.f32 %v179, %v187
  %v190 = vlaneseq
  %v191 = vshrl.u32 %v190, 7
  %v192 = vsub.s32 2, %v191
  %v193 = vrot.slane %v24, %v192
  %v194 = vlaneseq
  %v195 = vshrl.u32 %v194, 7
  %v196 = vsub.s32 2, %v195
  %v197 = vrot.slane %v25, %v196
  %v198 = vadd.f32 %v188, %v193
  %v199 = vadd.f32 %v189, %v197
  %v200 = vmax.f32 %v198, 0.0
  %v201 = vmax.f32 %v199, 0.0
  %v202 = vld [vmem:[%s2] sm:$0xff]
  %v203 = vld [vmem:[%s2 + $0x8] sm:$0xff]
  %v204 = vld [vmem:[%s2 + $0x10] sm:$0xff]
  %v205 = vld [vmem:[%s2 + $0x18] sm:$0xff]
  %v206 = vld [vmem:[%s2 + $0x20] sm:$0xff]
  %v207 = vld [vmem:[%s2 + $0x28] sm:$0xff]
  %v208 = vld [vmem:[%s2 + $0x30] sm:$0xff]
  %v209 = vld [vmem:[%s2 + $0x38] sm:$0xff]
  %v210 = vld [vmem:[%s2 + $0x40] sm:$0xff]
  %v211 = vld [vmem:[%s2 + $0x48] sm:$0xff]
  %v212 = vld [vmem:[%s2 + $0x50] sm:$0xff]
  %v213 = vld [vmem:[%s2 + $0x58] sm:$0xff]
  %v214 = vld [vmem:[%s2 + $0x60] sm:$0xff]
  %v215 = vld [vmem:[%s2 + $0x68] sm:$0xff]
  %v216 = vld [vmem:[%s2 + $0x70] sm:$0xff]
  %v217 = vld [vmem:[%s2 + $0x78] sm:$0xff]
  %v218 = vld [vmem:[%s2 + $0x80] sm:$0xff]
  %v219 = vld [vmem:[%s2 + $0x88] sm:$0xff]
  %v220 = vld [vmem:[%s2 + $0x90] sm:$0xff]
  %v221 = vld [vmem:[%s2 + $0x98] sm:$0xff]
  %v222 = vld [vmem:[%s2 + $0xa0] sm:$0xff]
  %v223 = vld [vmem:[%s2 + $0xa8] sm:$0xff]
  %v224 = vld [vmem:[%s2 + $0xb0] sm:$0xff]
  %v225 = vld [vmem:[%s2 + $0xb8] sm:$0xff]
  %v226 = vld [vmem:[%s2 + $0xc0] sm:$0xff]
  %v227 = vld [vmem:[%s2 + $0xc8] sm:$0xff]
  %v228 = vld [vmem:[%s2 + $0xd0] sm:$0xff]
  %v229 = vld [vmem:[%s2 + $0xd8] sm:$0xff]
  %v230 = vld [vmem:[%s2 + $0xe0] sm:$0xff]
  %v231 = vld [vmem:[%s2 + $0xe8] sm:$0xff]
  %v232 = vld [vmem:[%s2 + $0xf0] sm:$0xff]
  %v233 = vld [vmem:[%s2 + $0xf8] sm:$0xff]
  %v234 = vlaneseq
  %v235 = vshrl.u32 %v234, 7
  %v236 = vsub.s32 3, %v235
  %v237 = vrot.slane %v24, %v236
  %238 = vmatprep.subr.mxu0 0.0
  %239 = vmatpush1.msra.mxu0 %v202
  %240 = vmatprep.subr.mxu0 0.0
  %241 = vmatpush1.msra.mxu0 %v203
  %242 = vmatprep.subr.mxu0 0.0
  %243 = vmatpush1.msra.mxu0 %v204
  %244 = vmatprep.subr.mxu0 0.0
  %245 = vmatpush1.msra.mxu0 %v205
  %246 = vmatprep.subr.mxu0 0.0
  %247 = vmatpush1.msra.mxu0 %v206
  %248 = vmatprep.subr.mxu0 0.0
  %249 = vmatpush1.msra.mxu0 %v207
  %250 = vmatprep.subr.mxu0 0.0
  %251 = vmatpush1.msra.mxu0 %v208
  %252 = vmatprep.subr.mxu0 0.0
  %253 = vmatpush1.msra.mxu0 %v209
  %254 = vmatprep.subr.mxu0 0.0
  %255 = vmatpush1.msra.mxu0 %v210
  %256 = vmatprep.subr.mxu0 0.0
  %257 = vmatpush1.msra.mxu0 %v211
  %258 = vmatprep.subr.mxu0 0.0
  %259 = vmatpush1.msra.mxu0 %v212
  %260 = vmatprep.subr.mxu0 0.0
  %261 = vmatpush1.msra.mxu0 %v213
  %262 = vmatprep.subr.mxu0 0.0
  %263 = vmatpush1.msra.mxu0 %v214
  %264 = vmatprep.subr.mxu0 0.0
  %265 = vmatpush1.msra.mxu0 %v215
  %266 = vmatprep.subr.mxu0 0.0
  %267 = vmatpush1.msra.mxu0 %v216
  %268 = vmatprep.subr.mxu0 0.0
  %269 = vmatpush1.msra.mxu0 %v217
  %270 = vmatprep.subr.mxu0 0.0
  %271 = vmatpush1.msra.mxu0 %v218
  %272 = vmatprep.subr.mxu0 0.0
  %273 = vmatpush1.msra.mxu0 %v219
  %274 = vmatprep.subr.mxu0 0.0
  %275 = vmatpush1.msra.mxu0 %v220
  %276 = vmatprep.subr.mxu0 0.0
  %277 = vmatpush1.msra.mxu0 %v221
  %278 = vmatprep.subr.mxu0 0.0
  %279 = vmatpush1.msra.mxu0 %v222
  %280 = vmatprep.subr.mxu0 0.0
  %281 = vmatpush1.msra.mxu0 %v223
  %282 = vmatprep.subr.mxu0 0.0
  %283 = vmatpush1.msra.mxu0 %v224
  %284 = vmatprep.subr.mxu0 0.0
  %285 = vmatpush1.msra.mxu0 %v225
  %286 = vmatprep.subr.mxu0 0.0
  %287 = vmatpush1.msra.mxu0 %v226
  %288 = vmatprep.subr.mxu0 0.0
  %289 = vmatpush1.msra.mxu0 %v227
  %290 = vmatprep.subr.mxu0 0.0
  %291 = vmatpush1.msra.mxu0 %v228
  %292 = vmatprep.subr.mxu0 0.0
  %293 = vmatpush1.msra.mxu0 %v229
  %294 = vmatprep.subr.mxu0 0.0
  %295 = vmatpush1.msra.mxu0 %v230
  %296 = vmatprep.subr.mxu0 0.0
  %297 = vmatpush1.msra.mxu0 %v231
  %298 = vmatprep.subr.mxu0 0.0
  %299 = vmatpush1.msra.mxu0 %v232
  %300 = vmatprep.subr.mxu0 0.0
  %301 = vmatpush1.msra.mxu0 %v233
  %302 = vmatprep.mubr.f32.mxu0 %v201
  %303 = vmatmul.mubr.f32.gmra.mrb[0].mxu0 %v200
  %v304 = vpop.f32.mrb[0].mxu0
  %v305 = vadd.f32 %v237, %v304
  %v306 = vpop.f32.mrb[0].mxu0
  %307 = vdwg.mxu0
  %vm308 = vcmp.lt.s32.totalorder %v122, 64
  %v309 = vsel %vm308, 1, 0
  %v310 = vcvt.s32.f32 %v309
  %v311 = vsub.f32 1.0, %v310
  %v312 = vmul.f32 %v305, %v310
  %313 = vadd.xlane.f32.xlu0 %v312
  %v314 = vpop.xlane.xlu0 %313
  %v315 = vmul.f32 %v314, 0.015625
  %v316 = vmul.f32 %v305, %v311
  %317 = vadd.xlane.f32.xlu0 %v316
  %v318 = vpop.xlane.xlu0 %317
  %v319 = vmul.f32 %v318, 0.015625
  %v320 = vmul.f32 %v315, %v310
  %v321 = vmul.f32 %v319, %v311
  %v322 = vadd.f32 %v320, %v321
  %v323 = vsub.f32 %v305, %v322
  %v324 = vmul.f32 %v323, %v310
  %v325 = vmul.f32 %v324, %v324
  %326 = vadd.xlane.f32.xlu0 %v325
  %v327 = vpop.xlane.xlu0 %326
  %v328 = vmul.f32 %v327, 0.015625
  %v329 = vmul.f32 %v323, %v311
  %v330 = vmul.f32 %v329, %v329
  %331 = vadd.xlane.f32.xlu0 %v330
  %v332 = vpop.xlane.xlu0 %331
  %v333 = vmul.f32 %v332, 0.015625
  %v334 = vadd.f32 %v328, 1e-05
  %v335 = vrsqrt.pop %v334
  %v336 = vmul.f32 %v335, %v310
  %v337 = vadd.f32 %v333, 1e-05
  %v338 = vrsqrt.pop %v337
  %v339 = vmul.f32 %v338, %v311
  %v340 = vadd.f32 %v336, %v339
  %v341 = vmul.f32 %v323, %v340
  %v342 = vlaneseq
  %v343 = vshrl.u32 %v342, 7
  %v344 = vsub.s32 4, %v343
  %v345 = vrot.slane %v24, %v344
  %v346 = vmul.f32 %v341, %v345
  %v347 = vlaneseq
  %v348 = vshrl.u32 %v347, 7
  %v349 = vsub.s32 5, %v348
  %v350 = vrot.slane %v24, %v349
  %v351 = vadd.f32 %v346, %v350
  %v352 = vmax.f32 %v351, 0.0
  %v353 = vld [vmem:[%s3] sm:$0xff]
  %v354 = vld [vmem:[%s3 + $0x8] sm:$0xff]
  %v355 = vld [vmem:[%s3 + $0x10] sm:$0xff]
  %v356 = vld [vmem:[%s3 + $0x18] sm:$0xff]
  %v357 = vld [vmem:[%s3 + $0x20] sm:$0xff]
  %v358 = vld [vmem:[%s3 + $0x28] sm:$0xff]
  %v359 = vld [vmem:[%s3 + $0x30] sm:$0xff]
  %v360 = vld [vmem:[%s3 + $0x38] sm:$0xff]
  %v361 = vld [vmem:[%s3 + $0x40] sm:$0xff]
  %v362 = vld [vmem:[%s3 + $0x48] sm:$0xff]
  %v363 = vld [vmem:[%s3 + $0x50] sm:$0xff]
  %v364 = vld [vmem:[%s3 + $0x58] sm:$0xff]
  %v365 = vld [vmem:[%s3 + $0x60] sm:$0xff]
  %v366 = vld [vmem:[%s3 + $0x68] sm:$0xff]
  %v367 = vld [vmem:[%s3 + $0x70] sm:$0xff]
  %v368 = vld [vmem:[%s3 + $0x78] sm:$0xff]
  %v369 = vlaneseq
  %v370 = vshrl.u32 %v369, 7
  %v371 = vsub.s32 6, %v370
  %v372 = vrot.slane %v24, %v371
  %373 = vmatprep.subr.mxu0 0.0
  %374 = vmatpush1.msra.mxu0 %v353
  %375 = vmatprep.subr.mxu0 0.0
  %376 = vmatpush1.msra.mxu0 %v354
  %377 = vmatprep.subr.mxu0 0.0
  %378 = vmatpush1.msra.mxu0 %v355
  %379 = vmatprep.subr.mxu0 0.0
  %380 = vmatpush1.msra.mxu0 %v356
  %381 = vmatprep.subr.mxu0 0.0
  %382 = vmatpush1.msra.mxu0 %v357
  %383 = vmatprep.subr.mxu0 0.0
  %384 = vmatpush1.msra.mxu0 %v358
  %385 = vmatprep.subr.mxu0 0.0
  %386 = vmatpush1.msra.mxu0 %v359
  %387 = vmatprep.subr.mxu0 0.0
  %388 = vmatpush1.msra.mxu0 %v360
  %389 = vmatprep.subr.mxu0 0.0
  %390 = vmatpush1.msra.mxu0 %v361
  %391 = vmatprep.subr.mxu0 0.0
  %392 = vmatpush1.msra.mxu0 %v362
  %393 = vmatprep.subr.mxu0 0.0
  %394 = vmatpush1.msra.mxu0 %v363
  %395 = vmatprep.subr.mxu0 0.0
  %396 = vmatpush1.msra.mxu0 %v364
  %397 = vmatprep.subr.mxu0 0.0
  %398 = vmatpush1.msra.mxu0 %v365
  %399 = vmatprep.subr.mxu0 0.0
  %400 = vmatpush1.msra.mxu0 %v366
  %401 = vmatprep.subr.mxu0 0.0
  %402 = vmatpush1.msra.mxu0 %v367
  %403 = vmatprep.subr.mxu0 0.0
  %404 = vmatpush1.msra.mxu0 %v368
  %405 = vmatprep.subr.mxu0 0.0
  %406 = vmatpush1.msra.mxu0 0.0
  %407 = vmatprep.subr.mxu0 0.0
  %408 = vmatpush1.msra.mxu0 0.0
  %409 = vmatprep.subr.mxu0 0.0
  %410 = vmatpush1.msra.mxu0 0.0
  %411 = vmatprep.subr.mxu0 0.0
  %412 = vmatpush1.msra.mxu0 0.0
  %413 = vmatprep.subr.mxu0 0.0
  %414 = vmatpush1.msra.mxu0 0.0
  %415 = vmatprep.subr.mxu0 0.0
  %416 = vmatpush1.msra.mxu0 0.0
  %417 = vmatprep.subr.mxu0 0.0
  %418 = vmatpush1.msra.mxu0 0.0
  %419 = vmatprep.subr.mxu0 0.0
  %420 = vmatpush1.msra.mxu0 0.0
  %421 = vmatprep.subr.mxu0 0.0
  %422 = vmatpush1.msra.mxu0 0.0
  %423 = vmatprep.subr.mxu0 0.0
  %424 = vmatpush1.msra.mxu0 0.0
  %425 = vmatprep.subr.mxu0 0.0
  %426 = vmatpush1.msra.mxu0 0.0
  %427 = vmatprep.subr.mxu0 0.0
  %428 = vmatpush1.msra.mxu0 0.0
  %429 = vmatprep.subr.mxu0 0.0
  %430 = vmatpush1.msra.mxu0 0.0
  %431 = vmatprep.subr.mxu0 0.0
  %432 = vmatpush1.msra.mxu0 0.0
  %433 = vmatprep.subr.mxu0 0.0
  %434 = vmatpush1.msra.mxu0 0.0
  %435 = vmatprep.subr.mxu0 0.0
  %436 = vmatpush1.msra.mxu0 0.0
  %437 = vmatprep.mubr.f32.mxu0 0.0
  %438 = vmatmul.mubr.f32.gmra.mrb[0].mxu0 %v352
  %v439 = vpop.f32.mrb[0].mxu0
  %v440 = vadd.f32 %v372, %v439
  %v441 = vpop.f32.mrb[0].mxu0
  %442 = vdwg.mxu0
  %v443 = vmul.f32 %v440, %v310
  %vm444 = vcmask 785408
  %v445 = vsel %vm444, %v443, 0.0
  %446 = vadd.xlane.f32.xlu0 %v445
  %v447 = vpop.xlane.xlu0 %446
  %v448 = vmul.f32 %v447, 0.015625
  %v449 = vmul.f32 %v440, %v311
  %v450 = vsel %vm444, %v449, 0.0
  %451 = vadd.xlane.f32.xlu0 %v450
  %v452 = vpop.xlane.xlu0 %451
  %v453 = vmul.f32 %v452, 0.03125
  %v454 = vmul.f32 %v448, %v310
  %v455 = vmul.f32 %v453, %v311
  %v456 = vadd.f32 %v454, %v455
  %v457 = vsub.f32 %v440, %v456
  %v458 = vmul.f32 %v457, %v310
  %v459 = vmul.f32 %v458, %v458
  %v460 = vsel %vm444, %v459, 0.0
  %461 = vadd.xlane.f32.xlu0 %v460
  %v462 = vpop.xlane.xlu0 %461
  %v463 = vmul.f32 %v462, 0.015625
  %v464 = vmul.f32 %v457, %v311
  %v465 = vmul.f32 %v464, %v464
  %v466 = vsel %vm444, %v465, 0.0
  %467 = vadd.xlane.f32.xlu0 %v466
  %v468 = vpop.xlane.xlu0 %467
  %v469 = vmul.f32 %v468, 0.03125
  %v470 = vadd.f32 %v463, 1e-05
  %v471 = vrsqrt.pop %v470
  %v472 = vmul.f32 %v471, %v310
  %v473 = vadd.f32 %v469, 1e-05
  %v474 = vrsqrt.pop %v473
  %v475 = vmul.f32 %v474, %v311
  %v476 = vadd.f32 %v472, %v475
  %v477 = vmul.f32 %v457, %v476
  %v478 = vlaneseq
  %v479 = vshrl.u32 %v478, 7
  %v480 = vsub.s32 7, %v479
  %v481 = vrot.slane %v24, %v480
  %v482 = vmul.f32 %v477, %v481
  %v483 = vlaneseq
  %v484 = vshrl.u32 %v483, 7
  %v485 = vsub.s32 0, %v484
  %v486 = vrot.slane %v26, %v485
  %v487 = vadd.f32 %v482, %v486
  %v488 = vmax.f32 %v487, 0.0
  %v489 = vld [vmem:[%s4] sm:$0xff]
  %v490 = vld [vmem:[%s4 + $0x8] sm:$0xff]
  %v491 = vld [vmem:[%s4 + $0x10] sm:$0xff]
  %v492 = vld [vmem:[%s4 + $0x18] sm:$0xff]
  %v493 = vld [vmem:[%s4 + $0x20] sm:$0xff]
  %v494 = vld [vmem:[%s4 + $0x28] sm:$0xff]
  %v495 = vld [vmem:[%s4 + $0x30] sm:$0xff]
  %v496 = vld [vmem:[%s4 + $0x38] sm:$0xff]
  %v497 = vld [vmem:[%s4 + $0x40] sm:$0xff]
  %v498 = vld [vmem:[%s4 + $0x48] sm:$0xff]
  %v499 = vld [vmem:[%s4 + $0x50] sm:$0xff]
  %v500 = vld [vmem:[%s4 + $0x58] sm:$0xff]
  %v501 = vlaneseq
  %v502 = vshrl.u32 %v501, 7
  %v503 = vsub.s32 1, %v502
  %v504 = vrot.slane %v26, %v503
  %v506 = vsel %vm444, %v488, 0
  %508 = vmatprep.subr.mxu0 0.0
  %509 = vmatpush1.msra.mxu0 %v489
  %510 = vmatprep.subr.mxu0 0.0
  %511 = vmatpush1.msra.mxu0 %v490
  %512 = vmatprep.subr.mxu0 0.0
  %513 = vmatpush1.msra.mxu0 %v491
  %514 = vmatprep.subr.mxu0 0.0
  %515 = vmatpush1.msra.mxu0 %v492
  %516 = vmatprep.subr.mxu0 0.0
  %517 = vmatpush1.msra.mxu0 %v493
  %518 = vmatprep.subr.mxu0 0.0
  %519 = vmatpush1.msra.mxu0 %v494
  %520 = vmatprep.subr.mxu0 0.0
  %521 = vmatpush1.msra.mxu0 %v495
  %522 = vmatprep.subr.mxu0 0.0
  %523 = vmatpush1.msra.mxu0 %v496
  %524 = vmatprep.subr.mxu0 0.0
  %525 = vmatpush1.msra.mxu0 %v497
  %526 = vmatprep.subr.mxu0 0.0
  %527 = vmatpush1.msra.mxu0 %v498
  %528 = vmatprep.subr.mxu0 0.0
  %529 = vmatpush1.msra.mxu0 %v499
  %530 = vmatprep.subr.mxu0 0.0
  %531 = vmatpush1.msra.mxu0 %v500
  %532 = vmatprep.subr.mxu0 0.0
  %533 = vmatpush1.msra.mxu0 0.0
  %534 = vmatprep.subr.mxu0 0.0
  %535 = vmatpush1.msra.mxu0 0.0
  %536 = vmatprep.subr.mxu0 0.0
  %537 = vmatpush1.msra.mxu0 0.0
  %538 = vmatprep.subr.mxu0 0.0
  %539 = vmatpush1.msra.mxu0 0.0
  %540 = vmatprep.subr.mxu0 0.0
  %541 = vmatpush1.msra.mxu0 0.0
  %542 = vmatprep.subr.mxu0 0.0
  %543 = vmatpush1.msra.mxu0 0.0
  %544 = vmatprep.subr.mxu0 0.0
  %545 = vmatpush1.msra.mxu0 0.0
  %546 = vmatprep.subr.mxu0 0.0
  %547 = vmatpush1.msra.mxu0 0.0
  %548 = vmatprep.subr.mxu0 0.0
  %549 = vmatpush1.msra.mxu0 0.0
  %550 = vmatprep.subr.mxu0 0.0
  %551 = vmatpush1.msra.mxu0 0.0
  %552 = vmatprep.subr.mxu0 0.0
  %553 = vmatpush1.msra.mxu0 0.0
  %554 = vmatprep.subr.mxu0 0.0
  %555 = vmatpush1.msra.mxu0 0.0
  %556 = vmatprep.subr.mxu0 0.0
  %557 = vmatpush1.msra.mxu0 0.0
  %558 = vmatprep.subr.mxu0 0.0
  %559 = vmatpush1.msra.mxu0 0.0
  %560 = vmatprep.subr.mxu0 0.0
  %561 = vmatpush1.msra.mxu0 0.0
  %562 = vmatprep.subr.mxu0 0.0
  %563 = vmatpush1.msra.mxu0 0.0
  %564 = vmatprep.subr.mxu0 0.0
  %565 = vmatpush1.msra.mxu0 0.0
  %566 = vmatprep.subr.mxu0 0.0
  %567 = vmatpush1.msra.mxu0 0.0
  %568 = vmatprep.subr.mxu0 0.0
  %569 = vmatpush1.msra.mxu0 0.0
  %570 = vmatprep.subr.mxu0 0.0
  %571 = vmatpush1.msra.mxu0 0.0
  %572 = vmatprep.mubr.f32.mxu0 0.0
  %573 = vmatmul.mubr.f32.gmra.mrb[0].mxu0 %v506
  %v574 = vpop.f32.mrb[0].mxu0
  %v575 = vadd.f32 %v504, %v574
  %v576 = vpop.f32.mrb[0].mxu0
  %577 = vdwg.mxu0
  %v578 = vtanh.pop %v575
  %vm579 = vcmask 15360
  %580 = vst.msk [vmem:[%s6] sm:$0xff] %vm579, %v578
  // Predicated region
  $region26: #{tpu_custom_call.1} parent=0 // pred_check
    _
  $region27: #{tpu_custom_call.1} parent=0 // pred_check_branch
    %582 = sbr.rel (0) target = $region29
  $region28: #{tpu_custom_call.1} parent=0 // pred_region
    _
  $region29: #{tpu_custom_call.1} parent=0 // pred_fallthru
    _
  // Predicated region
  $region30: #{tpu_custom_call.1} parent=0 // pred_check
    _
  $region31: #{tpu_custom_call.1} parent=0 // pred_check_branch
    %584 = sbr.rel (0) target = $region33
  $region32: #{tpu_custom_call.1} parent=0 // pred_region
    _
  $region33: #{tpu_custom_call.1} parent=0 // pred_fallthru
    _

</llo_original>
